<compile_context>
chip_gen: v6e
topology: v6e:2x2x1
jax: 0.10.0
libtpu: 0.0.40
codegen_flags: <defaults>
</compile_context>

<pallas_src>
import jax
import jax.numpy as jnp
import numpy as np
from jax import lax
from jax.experimental import pallas as pl
from jax.experimental.pallas import tpu as pltpu


def _round_up(n, m):
    return ((n + m - 1) // m) * m


# --------------------------- Pallas kernels ---------------------------------

def _spectral_mul_kernel(xr_ref, xi_ref, wr_ref, wi_ref, or_ref, oi_ref):
    """Per-lane complex channel contraction:
         out[b, o, l] = sum_i x[b, i, l] * w[i, o, l]   (complex, split re/im)
    Explicit accumulation over Cin bounds live temporaries to (B, tco, tl);
    plain 4-mul complex product (Karatsuba is a pessimization on the VPU)."""
    cin = xr_ref.shape[0]

    def body(i, carry):
        acc_r, acc_i = carry
        xr = xr_ref[i][:, None, :]      # (B, 1, tl)
        xi = xi_ref[i][:, None, :]
        wr = wr_ref[i][None, :, :]      # (1, tco, tl)
        wi = wi_ref[i][None, :, :]
        acc_r = acc_r + (xr * wr - xi * wi)
        acc_i = acc_i + (xr * wi + xi * wr)
        return acc_r, acc_i

    zero = jnp.zeros(or_ref.shape, jnp.float32)
    acc_r, acc_i = lax.fori_loop(0, cin, body, (zero, zero), unroll=True)
    or_ref[...] = acc_r                 # single unmasked full-block store
    oi_ref[...] = acc_i


def spectral_mul(xr, xi, wr, wi):
    """xr/xi: (Cin, B, L); wr/wi: (Cin, Cout, L); L is a multiple of 128.
       Returns (out_r, out_i), each (B, Cout, L) float32."""
    Cin, B, L = xr.shape
    Cout = wr.shape[1]

    # Cout tile (sublane rule: multiple of 8 or the full extent).
    tco = Cout
    if Cout % 8 == 0:
        for cand in (64, 32, 16, 8):
            if Cout % cand == 0:
                tco = cand
                break

    # Lane tile: largest multiple of 128 that divides L, capped at 1024, and
    # fitting a ~24 MiB VMEM budget (2x-buffered re+im in/out blocks + accs) —
    # keeps the footprint safe on v7x's 64 MiB VMEM.
    def _vmem_bytes(tl_):
        blocks = 4 * tl_ * (Cin * B + Cin * tco + B * tco) * 2   # re + im
        return 2 * blocks + 2 * 4 * B * tco * tl_                # dbl-buf + accs
    tl = 128
    for cand in range(min(1024, L), 127, -128):
        if L % cand == 0 and _vmem_bytes(cand) <= 24 * 2**20:
            tl = cand
            break

    flops = 8 * B * Cin * Cout * L
    bytes_accessed = 4 * 2 * (Cin * B * L + Cin * Cout * L + B * Cout * L)

    out_sds = jax.ShapeDtypeStruct((B, Cout, L), jnp.float32)
    return pl.pallas_call(
        _spectral_mul_kernel,
        out_shape=(out_sds, out_sds),
        grid=(Cout // tco, L // tl),
        in_specs=[
            pl.BlockSpec((Cin, B, tl), lambda o, l: (0, 0, l)),
            pl.BlockSpec((Cin, B, tl), lambda o, l: (0, 0, l)),
            pl.BlockSpec((Cin, tco, tl), lambda o, l: (0, o, l)),
            pl.BlockSpec((Cin, tco, tl), lambda o, l: (0, o, l)),
        ],
        out_specs=(
            pl.BlockSpec((B, tco, tl), lambda o, l: (0, o, l)),
            pl.BlockSpec((B, tco, tl), lambda o, l: (0, o, l)),
        ),
        compiler_params=pltpu.CompilerParams(
            dimension_semantics=("parallel", "parallel"),
            vmem_limit_bytes=32 * 1024 * 1024),
        cost_estimate=pl.CostEstimate(
            flops=int(flops), transcendentals=0,
            bytes_accessed=int(bytes_accessed)),
    )(xr, xi, wr, wi)


def _skip_add_gelu_kernel(x_ref, xfno_ref, w_ref, b_ref, o_ref):
    """1x1-conv skip (bf16 MXU matmul, f32 accumulate) + residual add +
    tanh-approx GELU in f32. Batch-packed block: static loop over Bt."""
    w = w_ref[...]                       # (Cout, Cin) bf16
    bias = b_ref[...]                    # (Cout, 1)  f32
    c = 0.7978845608028654               # sqrt(2/pi)
    for bb in range(x_ref.shape[0]):     # static, small batch-pack loop
        skip = jnp.dot(w, x_ref[bb], preferred_element_type=jnp.float32)
        y = xfno_ref[bb].astype(jnp.float32) + skip + bias
        o_ref[bb] = 0.5 * y * (1.0 + jnp.tanh(c * (y + 0.044715 * y * y * y)))


def skip_add_gelu(x3, xfno3, w, b):
    """x3: (B, Cin, N), xfno3: (B, Cout, N), w: (Cout, Cin), b: (Cout, 1).
    Inputs/weights carried as bf16 (mem-bound kernel), math + output in f32."""
    B, Cin, N = x3.shape
    Cout = xfno3.shape[1]

    # Target tile >= 512 lanes (or whole padded extent when smaller); pad N
    # directly to a multiple of the tile so it can never collapse to 128.
    bn = min(512, _round_up(N, 128))
    Np = _round_up(N, bn)
    if Np != N:
        pad = ((0, 0), (0, 0), (0, Np - N))
        x3 = jnp.pad(x3, pad)
        xfno3 = jnp.pad(xfno3, pad)

    # Pack batch elements into one block when N is small; cap ~2048 lanes/block.
    Bt = 1
    while Bt < B and B % (Bt * 2) == 0 and Bt * bn < 2048:
        Bt *= 2

    x3 = x3.astype(jnp.bfloat16)
    xfno3 = xfno3.astype(jnp.bfloat16)
    w = w.astype(jnp.bfloat16)
    b = b.astype(jnp.float32)

    flops = 2 * B * Cout * Cin * Np + 10 * B * Cout * Np
    bytes_accessed = (2 * B * Np * (Cin + Cout) + 4 * B * Cout * Np
                      + 2 * Cout * Cin + 4 * Cout)

    out = pl.pallas_call(
        _skip_add_gelu_kernel,
        out_shape=jax.ShapeDtypeStruct((B, Cout, Np), jnp.float32),
        grid=(B // Bt, Np // bn),
        in_specs=[
            pl.BlockSpec((Bt, Cin, bn), lambda bi, ni: (bi, 0, ni)),
            pl.BlockSpec((Bt, Cout, bn), lambda bi, ni: (bi, 0, ni)),
            pl.BlockSpec((Cout, Cin), lambda bi, ni: (0, 0)),
            pl.BlockSpec((Cout, 1), lambda bi, ni: (0, 0)),
        ],
        out_specs=pl.BlockSpec((Bt, Cout, bn), lambda bi, ni: (bi, 0, ni)),
        compiler_params=pltpu.CompilerParams(
            dimension_semantics=("parallel", "parallel"),
            vmem_limit_bytes=32 * 1024 * 1024),
        cost_estimate=pl.CostEstimate(
            flops=int(flops), transcendentals=int(B * Cout * Np),
            bytes_accessed=int(bytes_accessed)),
    )(x3, xfno3, w, b)
    return out[:, :, :N] if Np != N else out


# --------------------------- Main module (FNO blocks) ------------------------

class FNOBlocks:
    """Stack of n_layers FNO blocks; forward(x, index) applies block `index`."""

    def __init__(self, key, n_layers, channels, modes1, modes2):
        self.modes1, self.modes2 = modes1, modes2
        self.n_layers = n_layers
        C = channels
        M = modes1 * modes2
        # pos/neg halves folded into the lane dim, zero-padded to >=128 lanes.
        self.Lpad = _round_up(2 * M, 128)
        scale = 1.0 / (C * C)
        ks = jax.random.split(key, 4)
        # Spectral weights stored lane-packed once at init: (L, Cin, Cout, Lpad)
        # lanes [0,M) = positive-mode weights, [M,2M) = negative-mode weights.
        w_r = scale * jax.random.uniform(ks[0], (n_layers, C, C, 2 * M), jnp.float32)
        w_i = scale * jax.random.uniform(ks[1], (n_layers, C, C, 2 * M), jnp.float32)
        padw = ((0, 0), (0, 0), (0, 0), (0, self.Lpad - 2 * M))
        self.w_r = jnp.pad(w_r, padw)
        self.w_i = jnp.pad(w_i, padw)
        self.wskip = jax.random.normal(ks[2], (n_layers, C, C), jnp.float32) * (1.0 / C)
        self.bskip = jax.random.normal(ks[3], (n_layers, C), jnp.float32) * 0.01

    def forward(self, x, index, use_pallas=True):
        B, Cin, H, W = x.shape
        m1, m2 = self.modes1, self.modes2
        M = m1 * m2
        Wf = W // 2 + 1
        wr = self.w_r[index]                      # (Cin, Cout, Lpad)
        wi = self.w_i[index]
        Cout = wr.shape[1]

        # ---- Spectral convolution --------------------------------------
        x_ft = jnp.fft.rfft2(x)                   # (B, Cin, H, Wf) complex64
        x_pos = x_ft[:, :, :m1, :m2].reshape(B, Cin, M)
        x_neg = x_ft[:, :, H - m1:, :m2].reshape(B, Cin, M)

        if use_pallas:
            # Fold pos/neg halves into lanes, pad lane-dense, Cin leading
            # (in-kernel accumulation index).
            xm = jnp.concatenate([x_pos, x_neg], axis=-1)      # (B, Cin, 2M)
            xm = jnp.swapaxes(xm, 0, 1)                        # (Cin, B, 2M)
            xm = jnp.pad(xm, ((0, 0), (0, 0), (0, self.Lpad - 2 * M)))
            outr, outi = spectral_mul(jnp.real(xm), jnp.imag(xm), wr, wi)
            out_c = lax.complex(outr, outi)                    # (B, Cout, Lpad)
            out_pos = out_c[:, :, :M].reshape(B, Cout, m1, m2)
            out_neg = out_c[:, :, M:2 * M].reshape(B, Cout, m1, m2)
        else:
            w1 = (wr[..., :M] + 1j * wi[..., :M]).reshape(Cin, Cout, m1, m2)
            w2 = (wr[..., M:2 * M] + 1j * wi[..., M:2 * M]).reshape(Cin, Cout, m1, m2)
            out_pos = jnp.einsum('bixy,ioxy->boxy', x_pos.reshape(B, Cin, m1, m2), w1)
            out_neg = jnp.einsum('bixy,ioxy->boxy', x_neg.reshape(B, Cin, m1, m2), w2)

        # Assemble the zero-padded spectrum with one concat + one pad
        # (no jnp.zeros + scatter passes over the full (B,Cout,H,Wf) array).
        mid = jnp.zeros((B, Cout, H - 2 * m1, m2), out_pos.dtype)
        out_ft = jnp.concatenate([out_pos, mid, out_neg], axis=2)   # (B,Cout,H,m2)
        out_ft = jnp.pad(out_ft, ((0, 0), (0, 0), (0, 0), (0, Wf - m2)))
        x_fno = jnp.fft.irfft2(out_ft, s=(H, W)).astype(jnp.float32)

        # ---- Skip (1x1 conv) + add + GELU -------------------------------
        wsk = self.wskip[index]                   # (Cout, Cin)
        bsk = self.bskip[index]                   # (Cout,)
        if use_pallas:
            out3 = skip_add_gelu(x.reshape(B, Cin, H * W),        # free reshapes,
                                 x_fno.reshape(B, Cout, H * W),   # no transposes
                                 wsk, bsk.reshape(Cout, 1))
            out = out3.reshape(B, Cout, H, W)
        else:
            skip = jnp.einsum('oi,bihw->bohw', wsk, x) + bsk[None, :, None, None]
            y = x_fno + skip
            c = 0.7978845608028654
            out = 0.5 * y * (1.0 + jnp.tanh(c * (y + 0.044715 * y ** 3)))
        return out

    def forward_reference(self, x, index):
        return self.forward(x, index, use_pallas=False)


class SubModule:
    """Faithful port: forward simply delegates to main_module.forward(x, indices)."""

    def __init__(self, main_module, indices):
        self.main_module = main_module
        self.indices = indices

    def forward(self, x):
        return self.main_module.forward(x, self.indices)


# --------------------------- Demo ---------------------------------------

if __name__ == "__main__":
    key = jax.random.PRNGKey(0)
    B, C, H, W = 2, 8, 16, 16
    modes1, modes2 = 4, 4
    n_layers = 2

    kx, kp = jax.random.split(key)
    x = jax.random.normal(kx, (B, C, H, W), jnp.float32)

    main = FNOBlocks(kp, n_layers=n_layers, channels=C, modes1=modes1, modes2=modes2)
    sub = SubModule(main, indices=1)

    out = jax.block_until_ready(sub.forward(x))
    ref = jax.block_until_ready(main.forward_reference(x, 1))

    assert out.shape == (B, C, H, W) and out.dtype == jnp.float32
    # Tolerance accounts for the bf16 HBM traffic in skip_add_gelu (math is f32).
    assert np.allclose(np.asarray(out), np.asarray(ref), atol=2e-2, rtol=2e-2)
    print("KERNEL_OK")
</pallas_src>

<mosaic_0001>
module attributes {stable_mosaic.version = 11 : i64} {
  func.func @_spectral_mul_kernel(%arg0: i32, %arg1: i32, %arg2: memref<8x2x128xf32, #tpu.memory_space<vmem>>, %arg3: memref<8x2x128xf32, #tpu.memory_space<vmem>>, %arg4: memref<8x8x128xf32, #tpu.memory_space<vmem>>, %arg5: memref<8x8x128xf32, #tpu.memory_space<vmem>>, %arg6: memref<2x8x128xf32, #tpu.memory_space<vmem>>, %arg7: memref<2x8x128xf32, #tpu.memory_space<vmem>>) attributes {dimension_semantics = [#tpu.dimension_semantics<parallel>, #tpu.dimension_semantics<parallel>], iteration_bounds = array<i64: 1, 1>, scalar_prefetch = 0 : i64, scratch_operands = 0 : i64, tpu.core_type = #tpu.core_type<tc>, window_params = [{transform_indices = @transform_0, window_bounds = array<i64: 8, 2, 128>}, {transform_indices = @transform_1, window_bounds = array<i64: 8, 2, 128>}, {transform_indices = @transform_2, window_bounds = array<i64: 8, 8, 128>}, {transform_indices = @transform_3, window_bounds = array<i64: 8, 8, 128>}, {transform_indices = @transform_4, window_bounds = array<i64: 2, 8, 128>}, {transform_indices = @transform_5, window_bounds = array<i64: 2, 8, 128>}]} {
    %cst = arith.constant 0.000000e+00 : f32
    %0 = vector.broadcast %cst : f32 to vector<2x8x128xf32>
    %c0_i32 = arith.constant 0 : i32
    %1 = arith.index_cast %c0_i32 : i32 to index
    %c0 = arith.constant 0 : index
    %c0_0 = arith.constant 0 : index
    %2 = vector.load %arg2[%1, %c0, %c0_0] : memref<8x2x128xf32, #tpu.memory_space<vmem>>, vector<1x2x128xf32>
    %3 = vector.shape_cast %2 : vector<1x2x128xf32> to vector<2x128xf32>
    %4 = vector.shape_cast %3 : vector<2x128xf32> to vector<2x1x128xf32>
    %5 = arith.index_cast %c0_i32 : i32 to index
    %c0_1 = arith.constant 0 : index
    %c0_2 = arith.constant 0 : index
    %6 = vector.load %arg3[%5, %c0_1, %c0_2] : memref<8x2x128xf32, #tpu.memory_space<vmem>>, vector<1x2x128xf32>
    %7 = vector.shape_cast %6 : vector<1x2x128xf32> to vector<2x128xf32>
    %8 = vector.shape_cast %7 : vector<2x128xf32> to vector<2x1x128xf32>
    %9 = arith.index_cast %c0_i32 : i32 to index
    %c0_3 = arith.constant 0 : index
    %c0_4 = arith.constant 0 : index
    %10 = vector.load %arg4[%9, %c0_3, %c0_4] : memref<8x8x128xf32, #tpu.memory_space<vmem>>, vector<1x8x128xf32>
    %11 = vector.shape_cast %10 : vector<1x8x128xf32> to vector<8x128xf32>
    %12 = vector.shape_cast %11 : vector<8x128xf32> to vector<1x8x128xf32>
    %13 = arith.index_cast %c0_i32 : i32 to index
    %c0_5 = arith.constant 0 : index
    %c0_6 = arith.constant 0 : index
    %14 = vector.load %arg5[%13, %c0_5, %c0_6] : memref<8x8x128xf32, #tpu.memory_space<vmem>>, vector<1x8x128xf32>
    %15 = vector.shape_cast %14 : vector<1x8x128xf32> to vector<8x128xf32>
    %16 = vector.shape_cast %15 : vector<8x128xf32> to vector<1x8x128xf32>
    %17 = vector.broadcast %4 : vector<2x1x128xf32> to vector<2x8x128xf32>
    %18 = vector.broadcast %12 : vector<1x8x128xf32> to vector<2x8x128xf32>
    %19 = arith.mulf %17, %18 : vector<2x8x128xf32>
    %20 = vector.broadcast %8 : vector<2x1x128xf32> to vector<2x8x128xf32>
    %21 = vector.broadcast %16 : vector<1x8x128xf32> to vector<2x8x128xf32>
    %22 = arith.mulf %20, %21 : vector<2x8x128xf32>
    %23 = arith.subf %19, %22 : vector<2x8x128xf32>
    %24 = arith.addf %0, %23 : vector<2x8x128xf32>
    %25 = vector.broadcast %4 : vector<2x1x128xf32> to vector<2x8x128xf32>
    %26 = vector.broadcast %16 : vector<1x8x128xf32> to vector<2x8x128xf32>
    %27 = arith.mulf %25, %26 : vector<2x8x128xf32>
    %28 = vector.broadcast %8 : vector<2x1x128xf32> to vector<2x8x128xf32>
    %29 = vector.broadcast %12 : vector<1x8x128xf32> to vector<2x8x128xf32>
    %30 = arith.mulf %28, %29 : vector<2x8x128xf32>
    %31 = arith.addf %27, %30 : vector<2x8x128xf32>
    %32 = arith.addf %0, %31 : vector<2x8x128xf32>
    %c1_i32 = arith.constant 1 : i32
    %33 = arith.index_cast %c1_i32 : i32 to index
    %c0_7 = arith.constant 0 : index
    %c0_8 = arith.constant 0 : index
    %34 = vector.load %arg2[%33, %c0_7, %c0_8] : memref<8x2x128xf32, #tpu.memory_space<vmem>>, vector<1x2x128xf32>
    %35 = vector.shape_cast %34 : vector<1x2x128xf32> to vector<2x128xf32>
    %36 = vector.shape_cast %35 : vector<2x128xf32> to vector<2x1x128xf32>
    %37 = arith.index_cast %c1_i32 : i32 to index
    %c0_9 = arith.constant 0 : index
    %c0_10 = arith.constant 0 : index
    %38 = vector.load %arg3[%37, %c0_9, %c0_10] : memref<8x2x128xf32, #tpu.memory_space<vmem>>, vector<1x2x128xf32>
    %39 = vector.shape_cast %38 : vector<1x2x128xf32> to vector<2x128xf32>
    %40 = vector.shape_cast %39 : vector<2x128xf32> to vector<2x1x128xf32>
    %41 = arith.index_cast %c1_i32 : i32 to index
    %c0_11 = arith.constant 0 : index
    %c0_12 = arith.constant 0 : index
    %42 = vector.load %arg4[%41, %c0_11, %c0_12] : memref<8x8x128xf32, #tpu.memory_space<vmem>>, vector<1x8x128xf32>
    %43 = vector.shape_cast %42 : vector<1x8x128xf32> to vector<8x128xf32>
    %44 = vector.shape_cast %43 : vector<8x128xf32> to vector<1x8x128xf32>
    %45 = arith.index_cast %c1_i32 : i32 to index
    %c0_13 = arith.constant 0 : index
    %c0_14 = arith.constant 0 : index
    %46 = vector.load %arg5[%45, %c0_13, %c0_14] : memref<8x8x128xf32, #tpu.memory_space<vmem>>, vector<1x8x128xf32>
    %47 = vector.shape_cast %46 : vector<1x8x128xf32> to vector<8x128xf32>
    %48 = vector.shape_cast %47 : vector<8x128xf32> to vector<1x8x128xf32>
    %49 = vector.broadcast %36 : vector<2x1x128xf32> to vector<2x8x128xf32>
    %50 = vector.broadcast %44 : vector<1x8x128xf32> to vector<2x8x128xf32>
    %51 = arith.mulf %49, %50 : vector<2x8x128xf32>
    %52 = vector.broadcast %40 : vector<2x1x128xf32> to vector<2x8x128xf32>
    %53 = vector.broadcast %48 : vector<1x8x128xf32> to vector<2x8x128xf32>
    %54 = arith.mulf %52, %53 : vector<2x8x128xf32>
    %55 = arith.subf %51, %54 : vector<2x8x128xf32>
    %56 = arith.addf %24, %55 : vector<2x8x128xf32>
    %57 = vector.broadcast %36 : vector<2x1x128xf32> to vector<2x8x128xf32>
    %58 = vector.broadcast %48 : vector<1x8x128xf32> to vector<2x8x128xf32>
    %59 = arith.mulf %57, %58 : vector<2x8x128xf32>
    %60 = vector.broadcast %40 : vector<2x1x128xf32> to vector<2x8x128xf32>
    %61 = vector.broadcast %44 : vector<1x8x128xf32> to vector<2x8x128xf32>
    %62 = arith.mulf %60, %61 : vector<2x8x128xf32>
    %63 = arith.addf %59, %62 : vector<2x8x128xf32>
    %64 = arith.addf %32, %63 : vector<2x8x128xf32>
    %c2_i32 = arith.constant 2 : i32
    %65 = arith.index_cast %c2_i32 : i32 to index
    %c0_15 = arith.constant 0 : index
    %c0_16 = arith.constant 0 : index
    %66 = vector.load %arg2[%65, %c0_15, %c0_16] : memref<8x2x128xf32, #tpu.memory_space<vmem>>, vector<1x2x128xf32>
    %67 = vector.shape_cast %66 : vector<1x2x128xf32> to vector<2x128xf32>
    %68 = vector.shape_cast %67 : vector<2x128xf32> to vector<2x1x128xf32>
    %69 = arith.index_cast %c2_i32 : i32 to index
    %c0_17 = arith.constant 0 : index
    %c0_18 = arith.constant 0 : index
    %70 = vector.load %arg3[%69, %c0_17, %c0_18] : memref<8x2x128xf32, #tpu.memory_space<vmem>>, vector<1x2x128xf32>
    %71 = vector.shape_cast %70 : vector<1x2x128xf32> to vector<2x128xf32>
    %72 = vector.shape_cast %71 : vector<2x128xf32> to vector<2x1x128xf32>
    %73 = arith.index_cast %c2_i32 : i32 to index
    %c0_19 = arith.constant 0 : index
    %c0_20 = arith.constant 0 : index
    %74 = vector.load %arg4[%73, %c0_19, %c0_20] : memref<8x8x128xf32, #tpu.memory_space<vmem>>, vector<1x8x128xf32>
    %75 = vector.shape_cast %74 : vector<1x8x128xf32> to vector<8x128xf32>
    %76 = vector.shape_cast %75 : vector<8x128xf32> to vector<1x8x128xf32>
    %77 = arith.index_cast %c2_i32 : i32 to index
    %c0_21 = arith.constant 0 : index
    %c0_22 = arith.constant 0 : index
    %78 = vector.load %arg5[%77, %c0_21, %c0_22] : memref<8x8x128xf32, #tpu.memory_space<vmem>>, vector<1x8x128xf32>
    %79 = vector.shape_cast %78 : vector<1x8x128xf32> to vector<8x128xf32>
    %80 = vector.shape_cast %79 : vector<8x128xf32> to vector<1x8x128xf32>
    %81 = vector.broadcast %68 : vector<2x1x128xf32> to vector<2x8x128xf32>
    %82 = vector.broadcast %76 : vector<1x8x128xf32> to vector<2x8x128xf32>
    %83 = arith.mulf %81, %82 : vector<2x8x128xf32>
    %84 = vector.broadcast %72 : vector<2x1x128xf32> to vector<2x8x128xf32>
    %85 = vector.broadcast %80 : vector<1x8x128xf32> to vector<2x8x128xf32>
    %86 = arith.mulf %84, %85 : vector<2x8x128xf32>
    %87 = arith.subf %83, %86 : vector<2x8x128xf32>
    %88 = arith.addf %56, %87 : vector<2x8x128xf32>
    %89 = vector.broadcast %68 : vector<2x1x128xf32> to vector<2x8x128xf32>
    %90 = vector.broadcast %80 : vector<1x8x128xf32> to vector<2x8x128xf32>
    %91 = arith.mulf %89, %90 : vector<2x8x128xf32>
    %92 = vector.broadcast %72 : vector<2x1x128xf32> to vector<2x8x128xf32>
    %93 = vector.broadcast %76 : vector<1x8x128xf32> to vector<2x8x128xf32>
    %94 = arith.mulf %92, %93 : vector<2x8x128xf32>
    %95 = arith.addf %91, %94 : vector<2x8x128xf32>
    %96 = arith.addf %64, %95 : vector<2x8x128xf32>
    %c3_i32 = arith.constant 3 : i32
    %97 = arith.index_cast %c3_i32 : i32 to index
    %c0_23 = arith.constant 0 : index
    %c0_24 = arith.constant 0 : index
    %98 = vector.load %arg2[%97, %c0_23, %c0_24] : memref<8x2x128xf32, #tpu.memory_space<vmem>>, vector<1x2x128xf32>
    %99 = vector.shape_cast %98 : vector<1x2x128xf32> to vector<2x128xf32>
    %100 = vector.shape_cast %99 : vector<2x128xf32> to vector<2x1x128xf32>
    %101 = arith.index_cast %c3_i32 : i32 to index
    %c0_25 = arith.constant 0 : index
    %c0_26 = arith.constant 0 : index
    %102 = vector.load %arg3[%101, %c0_25, %c0_26] : memref<8x2x128xf32, #tpu.memory_space<vmem>>, vector<1x2x128xf32>
    %103 = vector.shape_cast %102 : vector<1x2x128xf32> to vector<2x128xf32>
    %104 = vector.shape_cast %103 : vector<2x128xf32> to vector<2x1x128xf32>
    %105 = arith.index_cast %c3_i32 : i32 to index
    %c0_27 = arith.constant 0 : index
    %c0_28 = arith.constant 0 : index
    %106 = vector.load %arg4[%105, %c0_27, %c0_28] : memref<8x8x128xf32, #tpu.memory_space<vmem>>, vector<1x8x128xf32>
    %107 = vector.shape_cast %106 : vector<1x8x128xf32> to vector<8x128xf32>
    %108 = vector.shape_cast %107 : vector<8x128xf32> to vector<1x8x128xf32>
    %109 = arith.index_cast %c3_i32 : i32 to index
    %c0_29 = arith.constant 0 : index
    %c0_30 = arith.constant 0 : index
    %110 = vector.load %arg5[%109, %c0_29, %c0_30] : memref<8x8x128xf32, #tpu.memory_space<vmem>>, vector<1x8x128xf32>
    %111 = vector.shape_cast %110 : vector<1x8x128xf32> to vector<8x128xf32>
    %112 = vector.shape_cast %111 : vector<8x128xf32> to vector<1x8x128xf32>
    %113 = vector.broadcast %100 : vector<2x1x128xf32> to vector<2x8x128xf32>
    %114 = vector.broadcast %108 : vector<1x8x128xf32> to vector<2x8x128xf32>
    %115 = arith.mulf %113, %114 : vector<2x8x128xf32>
    %116 = vector.broadcast %104 : vector<2x1x128xf32> to vector<2x8x128xf32>
    %117 = vector.broadcast %112 : vector<1x8x128xf32> to vector<2x8x128xf32>
    %118 = arith.mulf %116, %117 : vector<2x8x128xf32>
    %119 = arith.subf %115, %118 : vector<2x8x128xf32>
    %120 = arith.addf %88, %119 : vector<2x8x128xf32>
    %121 = vector.broadcast %100 : vector<2x1x128xf32> to vector<2x8x128xf32>
    %122 = vector.broadcast %112 : vector<1x8x128xf32> to vector<2x8x128xf32>
    %123 = arith.mulf %121, %122 : vector<2x8x128xf32>
    %124 = vector.broadcast %104 : vector<2x1x128xf32> to vector<2x8x128xf32>
    %125 = vector.broadcast %108 : vector<1x8x128xf32> to vector<2x8x128xf32>
    %126 = arith.mulf %124, %125 : vector<2x8x128xf32>
    %127 = arith.addf %123, %126 : vector<2x8x128xf32>
    %128 = arith.addf %96, %127 : vector<2x8x128xf32>
    %c4_i32 = arith.constant 4 : i32
    %129 = arith.index_cast %c4_i32 : i32 to index
    %c0_31 = arith.constant 0 : index
    %c0_32 = arith.constant 0 : index
    %130 = vector.load %arg2[%129, %c0_31, %c0_32] : memref<8x2x128xf32, #tpu.memory_space<vmem>>, vector<1x2x128xf32>
    %131 = vector.shape_cast %130 : vector<1x2x128xf32> to vector<2x128xf32>
    %132 = vector.shape_cast %131 : vector<2x128xf32> to vector<2x1x128xf32>
    %133 = arith.index_cast %c4_i32 : i32 to index
    %c0_33 = arith.constant 0 : index
    %c0_34 = arith.constant 0 : index
    %134 = vector.load %arg3[%133, %c0_33, %c0_34] : memref<8x2x128xf32, #tpu.memory_space<vmem>>, vector<1x2x128xf32>
    %135 = vector.shape_cast %134 : vector<1x2x128xf32> to vector<2x128xf32>
    %136 = vector.shape_cast %135 : vector<2x128xf32> to vector<2x1x128xf32>
    %137 = arith.index_cast %c4_i32 : i32 to index
    %c0_35 = arith.constant 0 : index
    %c0_36 = arith.constant 0 : index
    %138 = vector.load %arg4[%137, %c0_35, %c0_36] : memref<8x8x128xf32, #tpu.memory_space<vmem>>, vector<1x8x128xf32>
    %139 = vector.shape_cast %138 : vector<1x8x128xf32> to vector<8x128xf32>
    %140 = vector.shape_cast %139 : vector<8x128xf32> to vector<1x8x128xf32>
    %141 = arith.index_cast %c4_i32 : i32 to index
    %c0_37 = arith.constant 0 : index
    %c0_38 = arith.constant 0 : index
    %142 = vector.load %arg5[%141, %c0_37, %c0_38] : memref<8x8x128xf32, #tpu.memory_space<vmem>>, vector<1x8x128xf32>
    %143 = vector.shape_cast %142 : vector<1x8x128xf32> to vector<8x128xf32>
    %144 = vector.shape_cast %143 : vector<8x128xf32> to vector<1x8x128xf32>
    %145 = vector.broadcast %132 : vector<2x1x128xf32> to vector<2x8x128xf32>
    %146 = vector.broadcast %140 : vector<1x8x128xf32> to vector<2x8x128xf32>
    %147 = arith.mulf %145, %146 : vector<2x8x128xf32>
    %148 = vector.broadcast %136 : vector<2x1x128xf32> to vector<2x8x128xf32>
    %149 = vector.broadcast %144 : vector<1x8x128xf32> to vector<2x8x128xf32>
    %150 = arith.mulf %148, %149 : vector<2x8x128xf32>
    %151 = arith.subf %147, %150 : vector<2x8x128xf32>
    %152 = arith.addf %120, %151 : vector<2x8x128xf32>
    %153 = vector.broadcast %132 : vector<2x1x128xf32> to vector<2x8x128xf32>
    %154 = vector.broadcast %144 : vector<1x8x128xf32> to vector<2x8x128xf32>
    %155 = arith.mulf %153, %154 : vector<2x8x128xf32>
    %156 = vector.broadcast %136 : vector<2x1x128xf32> to vector<2x8x128xf32>
    %157 = vector.broadcast %140 : vector<1x8x128xf32> to vector<2x8x128xf32>
    %158 = arith.mulf %156, %157 : vector<2x8x128xf32>
    %159 = arith.addf %155, %158 : vector<2x8x128xf32>
    %160 = arith.addf %128, %159 : vector<2x8x128xf32>
    %c5_i32 = arith.constant 5 : i32
    %161 = arith.index_cast %c5_i32 : i32 to index
    %c0_39 = arith.constant 0 : index
    %c0_40 = arith.constant 0 : index
    %162 = vector.load %arg2[%161, %c0_39, %c0_40] : memref<8x2x128xf32, #tpu.memory_space<vmem>>, vector<1x2x128xf32>
    %163 = vector.shape_cast %162 : vector<1x2x128xf32> to vector<2x128xf32>
    %164 = vector.shape_cast %163 : vector<2x128xf32> to vector<2x1x128xf32>
    %165 = arith.index_cast %c5_i32 : i32 to index
    %c0_41 = arith.constant 0 : index
    %c0_42 = arith.constant 0 : index
    %166 = vector.load %arg3[%165, %c0_41, %c0_42] : memref<8x2x128xf32, #tpu.memory_space<vmem>>, vector<1x2x128xf32>
    %167 = vector.shape_cast %166 : vector<1x2x128xf32> to vector<2x128xf32>
    %168 = vector.shape_cast %167 : vector<2x128xf32> to vector<2x1x128xf32>
    %169 = arith.index_cast %c5_i32 : i32 to index
    %c0_43 = arith.constant 0 : index
    %c0_44 = arith.constant 0 : index
    %170 = vector.load %arg4[%169, %c0_43, %c0_44] : memref<8x8x128xf32, #tpu.memory_space<vmem>>, vector<1x8x128xf32>
    %171 = vector.shape_cast %170 : vector<1x8x128xf32> to vector<8x128xf32>
    %172 = vector.shape_cast %171 : vector<8x128xf32> to vector<1x8x128xf32>
    %173 = arith.index_cast %c5_i32 : i32 to index
    %c0_45 = arith.constant 0 : index
    %c0_46 = arith.constant 0 : index
    %174 = vector.load %arg5[%173, %c0_45, %c0_46] : memref<8x8x128xf32, #tpu.memory_space<vmem>>, vector<1x8x128xf32>
    %175 = vector.shape_cast %174 : vector<1x8x128xf32> to vector<8x128xf32>
    %176 = vector.shape_cast %175 : vector<8x128xf32> to vector<1x8x128xf32>
    %177 = vector.broadcast %164 : vector<2x1x128xf32> to vector<2x8x128xf32>
    %178 = vector.broadcast %172 : vector<1x8x128xf32> to vector<2x8x128xf32>
    %179 = arith.mulf %177, %178 : vector<2x8x128xf32>
    %180 = vector.broadcast %168 : vector<2x1x128xf32> to vector<2x8x128xf32>
    %181 = vector.broadcast %176 : vector<1x8x128xf32> to vector<2x8x128xf32>
    %182 = arith.mulf %180, %181 : vector<2x8x128xf32>
    %183 = arith.subf %179, %182 : vector<2x8x128xf32>
    %184 = arith.addf %152, %183 : vector<2x8x128xf32>
    %185 = vector.broadcast %164 : vector<2x1x128xf32> to vector<2x8x128xf32>
    %186 = vector.broadcast %176 : vector<1x8x128xf32> to vector<2x8x128xf32>
    %187 = arith.mulf %185, %186 : vector<2x8x128xf32>
    %188 = vector.broadcast %168 : vector<2x1x128xf32> to vector<2x8x128xf32>
    %189 = vector.broadcast %172 : vector<1x8x128xf32> to vector<2x8x128xf32>
    %190 = arith.mulf %188, %189 : vector<2x8x128xf32>
    %191 = arith.addf %187, %190 : vector<2x8x128xf32>
    %192 = arith.addf %160, %191 : vector<2x8x128xf32>
    %c6_i32 = arith.constant 6 : i32
    %193 = arith.index_cast %c6_i32 : i32 to index
    %c0_47 = arith.constant 0 : index
    %c0_48 = arith.constant 0 : index
    %194 = vector.load %arg2[%193, %c0_47, %c0_48] : memref<8x2x128xf32, #tpu.memory_space<vmem>>, vector<1x2x128xf32>
    %195 = vector.shape_cast %194 : vector<1x2x128xf32> to vector<2x128xf32>
    %196 = vector.shape_cast %195 : vector<2x128xf32> to vector<2x1x128xf32>
    %197 = arith.index_cast %c6_i32 : i32 to index
    %c0_49 = arith.constant 0 : index
    %c0_50 = arith.constant 0 : index
    %198 = vector.load %arg3[%197, %c0_49, %c0_50] : memref<8x2x128xf32, #tpu.memory_space<vmem>>, vector<1x2x128xf32>
    %199 = vector.shape_cast %198 : vector<1x2x128xf32> to vector<2x128xf32>
    %200 = vector.shape_cast %199 : vector<2x128xf32> to vector<2x1x128xf32>
    %201 = arith.index_cast %c6_i32 : i32 to index
    %c0_51 = arith.constant 0 : index
    %c0_52 = arith.constant 0 : index
    %202 = vector.load %arg4[%201, %c0_51, %c0_52] : memref<8x8x128xf32, #tpu.memory_space<vmem>>, vector<1x8x128xf32>
    %203 = vector.shape_cast %202 : vector<1x8x128xf32> to vector<8x128xf32>
    %204 = vector.shape_cast %203 : vector<8x128xf32> to vector<1x8x128xf32>
    %205 = arith.index_cast %c6_i32 : i32 to index
    %c0_53 = arith.constant 0 : index
    %c0_54 = arith.constant 0 : index
    %206 = vector.load %arg5[%205, %c0_53, %c0_54] : memref<8x8x128xf32, #tpu.memory_space<vmem>>, vector<1x8x128xf32>
    %207 = vector.shape_cast %206 : vector<1x8x128xf32> to vector<8x128xf32>
    %208 = vector.shape_cast %207 : vector<8x128xf32> to vector<1x8x128xf32>
    %209 = vector.broadcast %196 : vector<2x1x128xf32> to vector<2x8x128xf32>
    %210 = vector.broadcast %204 : vector<1x8x128xf32> to vector<2x8x128xf32>
    %211 = arith.mulf %209, %210 : vector<2x8x128xf32>
    %212 = vector.broadcast %200 : vector<2x1x128xf32> to vector<2x8x128xf32>
    %213 = vector.broadcast %208 : vector<1x8x128xf32> to vector<2x8x128xf32>
    %214 = arith.mulf %212, %213 : vector<2x8x128xf32>
    %215 = arith.subf %211, %214 : vector<2x8x128xf32>
    %216 = arith.addf %184, %215 : vector<2x8x128xf32>
    %217 = vector.broadcast %196 : vector<2x1x128xf32> to vector<2x8x128xf32>
    %218 = vector.broadcast %208 : vector<1x8x128xf32> to vector<2x8x128xf32>
    %219 = arith.mulf %217, %218 : vector<2x8x128xf32>
    %220 = vector.broadcast %200 : vector<2x1x128xf32> to vector<2x8x128xf32>
    %221 = vector.broadcast %204 : vector<1x8x128xf32> to vector<2x8x128xf32>
    %222 = arith.mulf %220, %221 : vector<2x8x128xf32>
    %223 = arith.addf %219, %222 : vector<2x8x128xf32>
    %224 = arith.addf %192, %223 : vector<2x8x128xf32>
    %c7_i32 = arith.constant 7 : i32
    %225 = arith.index_cast %c7_i32 : i32 to index
    %c0_55 = arith.constant 0 : index
    %c0_56 = arith.constant 0 : index
    %226 = vector.load %arg2[%225, %c0_55, %c0_56] : memref<8x2x128xf32, #tpu.memory_space<vmem>>, vector<1x2x128xf32>
    %227 = vector.shape_cast %226 : vector<1x2x128xf32> to vector<2x128xf32>
    %228 = vector.shape_cast %227 : vector<2x128xf32> to vector<2x1x128xf32>
    %229 = arith.index_cast %c7_i32 : i32 to index
    %c0_57 = arith.constant 0 : index
    %c0_58 = arith.constant 0 : index
    %230 = vector.load %arg3[%229, %c0_57, %c0_58] : memref<8x2x128xf32, #tpu.memory_space<vmem>>, vector<1x2x128xf32>
    %231 = vector.shape_cast %230 : vector<1x2x128xf32> to vector<2x128xf32>
    %232 = vector.shape_cast %231 : vector<2x128xf32> to vector<2x1x128xf32>
    %233 = arith.index_cast %c7_i32 : i32 to index
    %c0_59 = arith.constant 0 : index
    %c0_60 = arith.constant 0 : index
    %234 = vector.load %arg4[%233, %c0_59, %c0_60] : memref<8x8x128xf32, #tpu.memory_space<vmem>>, vector<1x8x128xf32>
    %235 = vector.shape_cast %234 : vector<1x8x128xf32> to vector<8x128xf32>
    %236 = vector.shape_cast %235 : vector<8x128xf32> to vector<1x8x128xf32>
    %237 = arith.index_cast %c7_i32 : i32 to index
    %c0_61 = arith.constant 0 : index
    %c0_62 = arith.constant 0 : index
    %238 = vector.load %arg5[%237, %c0_61, %c0_62] : memref<8x8x128xf32, #tpu.memory_space<vmem>>, vector<1x8x128xf32>
    %239 = vector.shape_cast %238 : vector<1x8x128xf32> to vector<8x128xf32>
    %240 = vector.shape_cast %239 : vector<8x128xf32> to vector<1x8x128xf32>
    %241 = vector.broadcast %228 : vector<2x1x128xf32> to vector<2x8x128xf32>
    %242 = vector.broadcast %236 : vector<1x8x128xf32> to vector<2x8x128xf32>
    %243 = arith.mulf %241, %242 : vector<2x8x128xf32>
    %244 = vector.broadcast %232 : vector<2x1x128xf32> to vector<2x8x128xf32>
    %245 = vector.broadcast %240 : vector<1x8x128xf32> to vector<2x8x128xf32>
    %246 = arith.mulf %244, %245 : vector<2x8x128xf32>
    %247 = arith.subf %243, %246 : vector<2x8x128xf32>
    %248 = arith.addf %216, %247 : vector<2x8x128xf32>
    %249 = vector.broadcast %228 : vector<2x1x128xf32> to vector<2x8x128xf32>
    %250 = vector.broadcast %240 : vector<1x8x128xf32> to vector<2x8x128xf32>
    %251 = arith.mulf %249, %250 : vector<2x8x128xf32>
    %252 = vector.broadcast %232 : vector<2x1x128xf32> to vector<2x8x128xf32>
    %253 = vector.broadcast %236 : vector<1x8x128xf32> to vector<2x8x128xf32>
    %254 = arith.mulf %252, %253 : vector<2x8x128xf32>
    %255 = arith.addf %251, %254 : vector<2x8x128xf32>
    %256 = arith.addf %224, %255 : vector<2x8x128xf32>
    %c8_i32 = arith.constant 8 : i32
    %c0_63 = arith.constant 0 : index
    %c0_64 = arith.constant 0 : index
    %c0_65 = arith.constant 0 : index
    %257 = vector.load %arg6[%c0_63, %c0_64, %c0_65] : memref<2x8x128xf32, #tpu.memory_space<vmem>>, vector<2x8x128xf32>
    tpu.vector_store %arg6[%c0_63, %c0_64, %c0_65], %248 {strides = array<i32>} : memref<2x8x128xf32, #tpu.memory_space<vmem>>, vector<2x8x128xf32>,
    %c0_66 = arith.constant 0 : index
    %c0_67 = arith.constant 0 : index
    %c0_68 = arith.constant 0 : index
    %258 = vector.load %arg7[%c0_66, %c0_67, %c0_68] : memref<2x8x128xf32, #tpu.memory_space<vmem>>, vector<2x8x128xf32>
    tpu.vector_store %arg7[%c0_66, %c0_67, %c0_68], %256 {strides = array<i32>} : memref<2x8x128xf32, #tpu.memory_space<vmem>>, vector<2x8x128xf32>,
    return
  }
  func.func @transform_0(%arg0: i32, %arg1: i32) -> (i32, i32, i32) {
    %c0_i32 = arith.constant 0 : i32
    %c0_i32_0 = arith.constant 0 : i32
    %c0_i32_1 = arith.constant 0 : i32
    return %c0_i32, %c0_i32_0, %arg1 : i32, i32, i32
  }
  func.func @transform_1(%arg0: i32, %arg1: i32) -> (i32, i32, i32) {
    %c0_i32 = arith.constant 0 : i32
    %c0_i32_0 = arith.constant 0 : i32
    %c0_i32_1 = arith.constant 0 : i32
    return %c0_i32, %c0_i32_0, %arg1 : i32, i32, i32
  }
  func.func @transform_2(%arg0: i32, %arg1: i32) -> (i32, i32, i32) {
    %c0_i32 = arith.constant 0 : i32
    %c0_i32_0 = arith.constant 0 : i32
    return %c0_i32, %arg0, %arg1 : i32, i32, i32
  }
  func.func @transform_3(%arg0: i32, %arg1: i32) -> (i32, i32, i32) {
    %c0_i32 = arith.constant 0 : i32
    %c0_i32_0 = arith.constant 0 : i32
    return %c0_i32, %arg0, %arg1 : i32, i32, i32
  }
  func.func @transform_4(%arg0: i32, %arg1: i32) -> (i32, i32, i32) {
    %c0_i32 = arith.constant 0 : i32
    %c0_i32_0 = arith.constant 0 : i32
    return %c0_i32, %arg0, %arg1 : i32, i32, i32
  }
  func.func @transform_5(%arg0: i32, %arg1: i32) -> (i32, i32, i32) {
    %c0_i32 = arith.constant 0 : i32
    %c0_i32_0 = arith.constant 0 : i32
    return %c0_i32, %arg0, %arg1 : i32, i32, i32
  }
}

</mosaic_0001>

<llo_original>
// kernel: tpu_custom_call.1
$region0: #{tpu_custom_call.1}
  #allocation0 [shape = 'u32[]', space=smem, size = 0x4, offset = 0x4, fixed_abs, tag = 'smem constant byte address 0x4 - core index']
  #allocation1 [shape = 'u32[144,128]{1,0:T(1,128)}', space=vmem, size = 0x12000, scoped, tag = 'internal scratch']
  %s0 = inlined_call_operand.hbm [shape: f32[8,2,128], index: 0, kind: input, shape index: {}]
  %s1 = inlined_call_operand.hbm [shape: f32[8,2,128], index: 1, kind: input, shape index: {}]
  %s2 = inlined_call_operand.hbm [shape: f32[8,8,128], index: 2, kind: input, shape index: {}]
  %s3 = inlined_call_operand.hbm [shape: f32[8,8,128], index: 3, kind: input, shape index: {}]
  %s4 = inlined_call_operand.hbm [shape: f32[2,8,128], index: 4, kind: output, shape index: {0}]
  %s5 = inlined_call_operand.hbm [shape: f32[2,8,128], index: 5, kind: output, shape index: {1}]
  %6 = xla_tuple %s4, %s5
  %s7 = sld [smem:[#allocation0]]
  $region50: #{tpu_custom_call.1} parent=0
    _
  %s9 = ssub.s32 1, %s7
  %s10 = scalar_select 0, %s9, %s7
  $region1: #{tpu_custom_call.1} parent=0
    #allocation2 [shape = 'u8[8192]{0}', space=vmem, size = 0x2000, scoped, tag = 'input window, operand 0, single buffered']
    #allocation3 [shape = 's32[1]{0}', space=sflag, size = 0x4, scoped, tag = 'scoped memory for tpu_custom_call.1']
    #allocation4 [shape = 's32[1]{0}', space=sflag, size = 0x4, scoped, tag = 'scoped memory for tpu_custom_call.1']
    #allocation5 [shape = 'u8[8192]{0}', space=vmem, size = 0x2000, scoped, tag = 'input window, operand 1, single buffered']
    #allocation6 [shape = 's32[1]{0}', space=sflag, size = 0x4, scoped, tag = 'scoped memory for tpu_custom_call.1']
    #allocation7 [shape = 'u8[32768]{0}', space=vmem, size = 0x8000, scoped, tag = 'input window, operand 2, single buffered']
    #allocation8 [shape = 'u8[32768]{0}', space=vmem, size = 0x8000, scoped, tag = 'input window, operand 3, single buffered']
    #allocation9 [shape = 's32[1]{0}', space=sflag, size = 0x4, scoped, tag = 'scoped memory for tpu_custom_call.1']
    #allocation10 [shape = 'u8[8192]{0}', space=vmem, size = 0x2000, scoped, tag = 'output window, operand 0, single buffered']
    #allocation11 [shape = 'u8[8192]{0}', space=vmem, size = 0x2000, scoped, tag = 'output window, operand 1, single buffered']
    #allocation12 [shape = 's32[1]{0}', space=sflag, size = 0x4, scoped, tag = 'scoped memory for tpu_custom_call.1']
    %11 = vsyncpa [#allocation3], 0
    %12 = vsyncpa [#allocation6], 0
    %13 = vsyncpa [#allocation9], 0
    %14 = vsyncpa [#allocation4], 0
    %15 = vsyncpa [#allocation12], 0
    // Predicated region
    $region2: #{tpu_custom_call.1} parent=1 // pred_check
      _
    $region3: #{tpu_custom_call.1} parent=1 // pred_check_branch
      %17 = sbr.rel (0) target = $region5
    $region4: #{tpu_custom_call.1} parent=1 // pred_region
      %s19 = ssub.s32 256, 256
      %20 = vsyncadd [#allocation3], %s19
      %s21 = sshll.u32 [#allocation2], 4
      %s22 = int_to_ptr.vmem [resolvable:$true] %s21
      %27 = dma.hbm_to_vmem [thread:$0]  %s0, 256, %s22, [#allocation3], 32, 32, 2
    $region5: #{tpu_custom_call.1} parent=1 // pred_fallthru
      _
    // Predicated region
    $region6: #{tpu_custom_call.1} parent=1 // pred_check
      _
    $region7: #{tpu_custom_call.1} parent=1 // pred_check_branch
      %29 = sbr.rel (0) target = $region9
    $region8: #{tpu_custom_call.1} parent=1 // pred_region
      %s31 = ssub.s32 256, 256
      %32 = vsyncadd [#allocation6], %s31
      %s33 = sshll.u32 [#allocation5], 4
      %s34 = int_to_ptr.vmem [resolvable:$true] %s33
      %39 = dma.hbm_to_vmem [thread:$0]  %s1, 256, %s34, [#allocation6], 32, 32, 2
    $region9: #{tpu_custom_call.1} parent=1 // pred_fallthru
      _
    // Predicated region
    $region10: #{tpu_custom_call.1} parent=1 // pred_check
      _
    $region11: #{tpu_custom_call.1} parent=1 // pred_check_branch
      %41 = sbr.rel (0) target = $region13
    $region12: #{tpu_custom_call.1} parent=1 // pred_region
      %s43 = ssub.s32 1024, 1024
      %44 = vsyncadd [#allocation6], %s43
      %s45 = sshll.u32 [#allocation7], 4
      %s46 = int_to_ptr.vmem [resolvable:$true] %s45
      %51 = dma.hbm_to_vmem [thread:$0]  %s2, 1024, %s46, [#allocation6], 128, 128, 8
    $region13: #{tpu_custom_call.1} parent=1 // pred_fallthru
      _
    // Predicated region
    $region14: #{tpu_custom_call.1} parent=1 // pred_check
      _
    $region15: #{tpu_custom_call.1} parent=1 // pred_check_branch
      %53 = sbr.rel (0) target = $region17
    $region16: #{tpu_custom_call.1} parent=1 // pred_region
      %s55 = ssub.s32 1024, 1024
      %56 = vsyncadd [#allocation9], %s55
      %s57 = sshll.u32 [#allocation8], 4
      %s58 = int_to_ptr.vmem [resolvable:$true] %s57
      %63 = dma.hbm_to_vmem [thread:$0]  %s3, 1024, %s58, [#allocation9], 128, 128, 8
    $region17: #{tpu_custom_call.1} parent=1 // pred_fallthru
      _
    // Predicated region
    $region18: #{tpu_custom_call.1} parent=1 // pred_check
      _
    $region19: #{tpu_custom_call.1} parent=1 // pred_check_branch
      %65 = sbr.rel (0) target = $region21
    $region20: #{tpu_custom_call.1} parent=1 // pred_region
      %66 = dma.done [#allocation3], 256
    $region21: #{tpu_custom_call.1} parent=1 // pred_fallthru
      _
    // Predicated region
    $region22: #{tpu_custom_call.1} parent=1 // pred_check
      _
    $region23: #{tpu_custom_call.1} parent=1 // pred_check_branch
      %68 = sbr.rel (0) target = $region25
    $region24: #{tpu_custom_call.1} parent=1 // pred_region
      %69 = dma.done [#allocation6], 256
    $region25: #{tpu_custom_call.1} parent=1 // pred_fallthru
      _
    // Predicated region
    $region26: #{tpu_custom_call.1} parent=1 // pred_check
      _
    $region27: #{tpu_custom_call.1} parent=1 // pred_check_branch
      %71 = sbr.rel (0) target = $region29
    $region28: #{tpu_custom_call.1} parent=1 // pred_region
      %72 = dma.done [#allocation6], 1024
    $region29: #{tpu_custom_call.1} parent=1 // pred_fallthru
      _
    // Predicated region
    $region30: #{tpu_custom_call.1} parent=1 // pred_check
      _
    $region31: #{tpu_custom_call.1} parent=1 // pred_check_branch
      %74 = sbr.rel (0) target = $region33
    $region32: #{tpu_custom_call.1} parent=1 // pred_region
      %75 = dma.done [#allocation9], 1024
    $region33: #{tpu_custom_call.1} parent=1 // pred_fallthru
      _
    %v76 = vld [vmem:[#allocation2] sm:$0x3]
    %v79 = vunpack.c.l.s4 1966171168
    %v80 = vunpack.c.0.s8 %v79
    %v81 = vlaneseq
    %v82 = vshrl.u32 %v81, 7
    %v83 = vsub.s32 %v80, %v82
    %v84 = vrot.slane %v76, %v83
    %v85 = vcombine.high %v84, %v84
    %v87 = vunpack.c.l.s4 1966171168
    %v88 = vunpack.c.0.s8 %v87
    %v89 = vlaneseq
    %v90 = vshrl.u32 %v89, 7
    %v91 = vsub.s32 %v88, %v90
    %v92 = vrot.slane %v84, %v91
    %v94 = vunpack.c.l.s4 1966171168
    %v95 = vunpack.c.0.s8 %v94
    %v96 = vlaneseq
    %v97 = vshrl.u32 %v96, 7
    %v98 = vsub.s32 %v95, %v97
    %v99 = vrot.slane %v85, %v98
    %v100 = vld [vmem:[#allocation5] sm:$0x3]
    %v103 = vunpack.c.l.s4 1966171168
    %v104 = vunpack.c.0.s8 %v103
    %v105 = vlaneseq
    %v106 = vshrl.u32 %v105, 7
    %v107 = vsub.s32 %v104, %v106
    %v108 = vrot.slane %v100, %v107
    %v109 = vcombine.high %v108, %v108
    %v111 = vunpack.c.l.s4 1966171168
    %v112 = vunpack.c.0.s8 %v111
    %v113 = vlaneseq
    %v114 = vshrl.u32 %v113, 7
    %v115 = vsub.s32 %v112, %v114
    %v116 = vrot.slane %v108, %v115
    %v118 = vunpack.c.l.s4 1966171168
    %v119 = vunpack.c.0.s8 %v118
    %v120 = vlaneseq
    %v121 = vshrl.u32 %v120, 7
    %v122 = vsub.s32 %v119, %v121
    %v123 = vrot.slane %v109, %v122
    %v124 = vld [vmem:[#allocation7] sm:$0xff]
    %v125 = vld [vmem:[#allocation8] sm:$0xff]
    %v126 = vlaneseq
    %v127 = vshrl.u32 %v126, 7
    %v128 = vsub.s32 0, %v127
    %v129 = vrot.slane %v92, %v128
    %v130 = vlaneseq
    %v131 = vshrl.u32 %v130, 7
    %v132 = vsub.s32 0, %v131
    %v133 = vrot.slane %v99, %v132
    %v136 = vmul.f32 %v129, %v124
    %v137 = vmul.f32 %v133, %v124
    %v138 = vlaneseq
    %v139 = vshrl.u32 %v138, 7
    %v140 = vsub.s32 0, %v139
    %v141 = vrot.slane %v116, %v140
    %v142 = vlaneseq
    %v143 = vshrl.u32 %v142, 7
    %v144 = vsub.s32 0, %v143
    %v145 = vrot.slane %v123, %v144
    %v148 = vmul.f32 %v141, %v125
    %v149 = vmul.f32 %v145, %v125
    %v150 = vsub.f32 %v136, %v148
    %v151 = vsub.f32 %v137, %v149
    %v152 = vadd.f32 %v150, 0.0
    %v153 = vadd.f32 %v151, 0.0
    %v154 = vmul.f32 %v129, %v125
    %v155 = vmul.f32 %v133, %v125
    %v156 = vmul.f32 %v141, %v124
    %v157 = vmul.f32 %v145, %v124
    %v158 = vadd.f32 %v154, %v156
    %v159 = vadd.f32 %v155, %v157
    %v160 = vadd.f32 %v158, 0.0
    %v161 = vadd.f32 %v159, 0.0
    %s162 = scalar_lea.vmem [#allocation2], 2
    %v163 = vld [vmem:[%s162] sm:$0x3]
    %v166 = vunpack.c.l.s4 1966171168
    %v167 = vunpack.c.0.s8 %v166
    %v168 = vlaneseq
    %v169 = vshrl.u32 %v168, 7
    %v170 = vsub.s32 %v167, %v169
    %v171 = vrot.slane %v163, %v170
    %v172 = vcombine.high %v171, %v171
    %v174 = vunpack.c.l.s4 1966171168
    %v175 = vunpack.c.0.s8 %v174
    %v176 = vlaneseq
    %v177 = vshrl.u32 %v176, 7
    %v178 = vsub.s32 %v175, %v177
    %v179 = vrot.slane %v171, %v178
    %v181 = vunpack.c.l.s4 1966171168
    %v182 = vunpack.c.0.s8 %v181
    %v183 = vlaneseq
    %v184 = vshrl.u32 %v183, 7
    %v185 = vsub.s32 %v182, %v184
    %v186 = vrot.slane %v172, %v185
    %s187 = scalar_lea.vmem [#allocation5], 2
    %v188 = vld [vmem:[%s187] sm:$0x3]
    %v191 = vunpack.c.l.s4 1966171168
    %v192 = vunpack.c.0.s8 %v191
    %v193 = vlaneseq
    %v194 = vshrl.u32 %v193, 7
    %v195 = vsub.s32 %v192, %v194
    %v196 = vrot.slane %v188, %v195
    %v197 = vcombine.high %v196, %v196
    %v199 = vunpack.c.l.s4 1966171168
    %v200 = vunpack.c.0.s8 %v199
    %v201 = vlaneseq
    %v202 = vshrl.u32 %v201, 7
    %v203 = vsub.s32 %v200, %v202
    %v204 = vrot.slane %v196, %v203
    %v206 = vunpack.c.l.s4 1966171168
    %v207 = vunpack.c.0.s8 %v206
    %v208 = vlaneseq
    %v209 = vshrl.u32 %v208, 7
    %v210 = vsub.s32 %v207, %v209
    %v211 = vrot.slane %v197, %v210
    %s212 = scalar_lea.vmem [#allocation7], 8
    %v213 = vld [vmem:[%s212] sm:$0xff]
    %s214 = scalar_lea.vmem [#allocation8], 8
    %v215 = vld [vmem:[%s214] sm:$0xff]
    %v216 = vlaneseq
    %v217 = vshrl.u32 %v216, 7
    %v218 = vsub.s32 0, %v217
    %v219 = vrot.slane %v179, %v218
    %v220 = vlaneseq
    %v221 = vshrl.u32 %v220, 7
    %v222 = vsub.s32 0, %v221
    %v223 = vrot.slane %v186, %v222
    %v226 = vmul.f32 %v219, %v213
    %v227 = vmul.f32 %v223, %v213
    %v228 = vlaneseq
    %v229 = vshrl.u32 %v228, 7
    %v230 = vsub.s32 0, %v229
    %v231 = vrot.slane %v204, %v230
    %v232 = vlaneseq
    %v233 = vshrl.u32 %v232, 7
    %v234 = vsub.s32 0, %v233
    %v235 = vrot.slane %v211, %v234
    %v238 = vmul.f32 %v231, %v215
    %v239 = vmul.f32 %v235, %v215
    %v240 = vsub.f32 %v226, %v238
    %v241 = vsub.f32 %v227, %v239
    %v242 = vadd.f32 %v152, %v240
    %v243 = vadd.f32 %v153, %v241
    %v244 = vmul.f32 %v219, %v215
    %v245 = vmul.f32 %v223, %v215
    %v246 = vmul.f32 %v231, %v213
    %v247 = vmul.f32 %v235, %v213
    %v248 = vadd.f32 %v244, %v246
    %v249 = vadd.f32 %v245, %v247
    %v250 = vadd.f32 %v160, %v248
    %v251 = vadd.f32 %v161, %v249
    %s252 = scalar_lea.vmem [#allocation2], 4
    %v253 = vld [vmem:[%s252] sm:$0x3]
    %v256 = vunpack.c.l.s4 1966171168
    %v257 = vunpack.c.0.s8 %v256
    %v258 = vlaneseq
    %v259 = vshrl.u32 %v258, 7
    %v260 = vsub.s32 %v257, %v259
    %v261 = vrot.slane %v253, %v260
    %v262 = vcombine.high %v261, %v261
    %v264 = vunpack.c.l.s4 1966171168
    %v265 = vunpack.c.0.s8 %v264
    %v266 = vlaneseq
    %v267 = vshrl.u32 %v266, 7
    %v268 = vsub.s32 %v265, %v267
    %v269 = vrot.slane %v261, %v268
    %v271 = vunpack.c.l.s4 1966171168
    %v272 = vunpack.c.0.s8 %v271
    %v273 = vlaneseq
    %v274 = vshrl.u32 %v273, 7
    %v275 = vsub.s32 %v272, %v274
    %v276 = vrot.slane %v262, %v275
    %s277 = scalar_lea.vmem [#allocation5], 4
    %v278 = vld [vmem:[%s277] sm:$0x3]
    %v281 = vunpack.c.l.s4 1966171168
    %v282 = vunpack.c.0.s8 %v281
    %v283 = vlaneseq
    %v284 = vshrl.u32 %v283, 7
    %v285 = vsub.s32 %v282, %v284
    %v286 = vrot.slane %v278, %v285
    %v287 = vcombine.high %v286, %v286
    %v289 = vunpack.c.l.s4 1966171168
    %v290 = vunpack.c.0.s8 %v289
    %v291 = vlaneseq
    %v292 = vshrl.u32 %v291, 7
    %v293 = vsub.s32 %v290, %v292
    %v294 = vrot.slane %v286, %v293
    %v296 = vunpack.c.l.s4 1966171168
    %v297 = vunpack.c.0.s8 %v296
    %v298 = vlaneseq
    %v299 = vshrl.u32 %v298, 7
    %v300 = vsub.s32 %v297, %v299
    %v301 = vrot.slane %v287, %v300
    %s302 = scalar_lea.vmem [#allocation7], 16
    %v303 = vld [vmem:[%s302] sm:$0xff]
    %s304 = scalar_lea.vmem [#allocation8], 16
    %v305 = vld [vmem:[%s304] sm:$0xff]
    %v306 = vlaneseq
    %v307 = vshrl.u32 %v306, 7
    %v308 = vsub.s32 0, %v307
    %v309 = vrot.slane %v269, %v308
    %v310 = vlaneseq
    %v311 = vshrl.u32 %v310, 7
    %v312 = vsub.s32 0, %v311
    %v313 = vrot.slane %v276, %v312
    %v316 = vmul.f32 %v309, %v303
    %v317 = vmul.f32 %v313, %v303
    %v318 = vlaneseq
    %v319 = vshrl.u32 %v318, 7
    %v320 = vsub.s32 0, %v319
    %v321 = vrot.slane %v294, %v320
    %v322 = vlaneseq
    %v323 = vshrl.u32 %v322, 7
    %v324 = vsub.s32 0, %v323
    %v325 = vrot.slane %v301, %v324
    %v328 = vmul.f32 %v321, %v305
    %v329 = vmul.f32 %v325, %v305
    %v330 = vsub.f32 %v316, %v328
    %v331 = vsub.f32 %v317, %v329
    %v332 = vadd.f32 %v242, %v330
    %v333 = vadd.f32 %v243, %v331
    %v334 = vmul.f32 %v309, %v305
    %v335 = vmul.f32 %v313, %v305
    %v336 = vmul.f32 %v321, %v303
    %v337 = vmul.f32 %v325, %v303
    %v338 = vadd.f32 %v334, %v336
    %v339 = vadd.f32 %v335, %v337
    %v340 = vadd.f32 %v250, %v338
    %v341 = vadd.f32 %v251, %v339
    %s342 = scalar_lea.vmem [#allocation2], 6
    %v343 = vld [vmem:[%s342] sm:$0x3]
    %v346 = vunpack.c.l.s4 1966171168
    %v347 = vunpack.c.0.s8 %v346
    %v348 = vlaneseq
    %v349 = vshrl.u32 %v348, 7
    %v350 = vsub.s32 %v347, %v349
    %v351 = vrot.slane %v343, %v350
    %v352 = vcombine.high %v351, %v351
    %v354 = vunpack.c.l.s4 1966171168
    %v355 = vunpack.c.0.s8 %v354
    %v356 = vlaneseq
    %v357 = vshrl.u32 %v356, 7
    %v358 = vsub.s32 %v355, %v357
    %v359 = vrot.slane %v351, %v358
    %v361 = vunpack.c.l.s4 1966171168
    %v362 = vunpack.c.0.s8 %v361
    %v363 = vlaneseq
    %v364 = vshrl.u32 %v363, 7
    %v365 = vsub.s32 %v362, %v364
    %v366 = vrot.slane %v352, %v365
    %s367 = scalar_lea.vmem [#allocation5], 6
    %v368 = vld [vmem:[%s367] sm:$0x3]
    %v371 = vunpack.c.l.s4 1966171168
    %v372 = vunpack.c.0.s8 %v371
    %v373 = vlaneseq
    %v374 = vshrl.u32 %v373, 7
    %v375 = vsub.s32 %v372, %v374
    %v376 = vrot.slane %v368, %v375
    %v377 = vcombine.high %v376, %v376
    %v379 = vunpack.c.l.s4 1966171168
    %v380 = vunpack.c.0.s8 %v379
    %v381 = vlaneseq
    %v382 = vshrl.u32 %v381, 7
    %v383 = vsub.s32 %v380, %v382
    %v384 = vrot.slane %v376, %v383
    %v386 = vunpack.c.l.s4 1966171168
    %v387 = vunpack.c.0.s8 %v386
    %v388 = vlaneseq
    %v389 = vshrl.u32 %v388, 7
    %v390 = vsub.s32 %v387, %v389
    %v391 = vrot.slane %v377, %v390
    %s392 = scalar_lea.vmem [#allocation7], 24
    %v393 = vld [vmem:[%s392] sm:$0xff]
    %s394 = scalar_lea.vmem [#allocation8], 24
    %v395 = vld [vmem:[%s394] sm:$0xff]
    %v396 = vlaneseq
    %v397 = vshrl.u32 %v396, 7
    %v398 = vsub.s32 0, %v397
    %v399 = vrot.slane %v359, %v398
    %v400 = vlaneseq
    %v401 = vshrl.u32 %v400, 7
    %v402 = vsub.s32 0, %v401
    %v403 = vrot.slane %v366, %v402
    %v406 = vmul.f32 %v399, %v393
    %v407 = vmul.f32 %v403, %v393
    %v408 = vlaneseq
    %v409 = vshrl.u32 %v408, 7
    %v410 = vsub.s32 0, %v409
    %v411 = vrot.slane %v384, %v410
    %v412 = vlaneseq
    %v413 = vshrl.u32 %v412, 7
    %v414 = vsub.s32 0, %v413
    %v415 = vrot.slane %v391, %v414
    %v418 = vmul.f32 %v411, %v395
    %v419 = vmul.f32 %v415, %v395
    %v420 = vsub.f32 %v406, %v418
    %v421 = vsub.f32 %v407, %v419
    %v422 = vadd.f32 %v332, %v420
    %v423 = vadd.f32 %v333, %v421
    %v424 = vmul.f32 %v399, %v395
    %v425 = vmul.f32 %v403, %v395
    %v426 = vmul.f32 %v411, %v393
    %v427 = vmul.f32 %v415, %v393
    %v428 = vadd.f32 %v424, %v426
    %v429 = vadd.f32 %v425, %v427
    %v430 = vadd.f32 %v340, %v428
    %v431 = vadd.f32 %v341, %v429
    %s432 = scalar_lea.vmem [#allocation2], 8
    %v433 = vld [vmem:[%s432] sm:$0x3]
    %v436 = vunpack.c.l.s4 1966171168
    %v437 = vunpack.c.0.s8 %v436
    %v438 = vlaneseq
    %v439 = vshrl.u32 %v438, 7
    %v440 = vsub.s32 %v437, %v439
    %v441 = vrot.slane %v433, %v440
    %v442 = vcombine.high %v441, %v441
    %v444 = vunpack.c.l.s4 1966171168
    %v445 = vunpack.c.0.s8 %v444
    %v446 = vlaneseq
    %v447 = vshrl.u32 %v446, 7
    %v448 = vsub.s32 %v445, %v447
    %v449 = vrot.slane %v441, %v448
    %v451 = vunpack.c.l.s4 1966171168
    %v452 = vunpack.c.0.s8 %v451
    %v453 = vlaneseq
    %v454 = vshrl.u32 %v453, 7
    %v455 = vsub.s32 %v452, %v454
    %v456 = vrot.slane %v442, %v455
    %s457 = scalar_lea.vmem [#allocation5], 8
    %v458 = vld [vmem:[%s457] sm:$0x3]
    %v461 = vunpack.c.l.s4 1966171168
    %v462 = vunpack.c.0.s8 %v461
    %v463 = vlaneseq
    %v464 = vshrl.u32 %v463, 7
    %v465 = vsub.s32 %v462, %v464
    %v466 = vrot.slane %v458, %v465
    %v467 = vcombine.high %v466, %v466
    %v469 = vunpack.c.l.s4 1966171168
    %v470 = vunpack.c.0.s8 %v469
    %v471 = vlaneseq
    %v472 = vshrl.u32 %v471, 7
    %v473 = vsub.s32 %v470, %v472
    %v474 = vrot.slane %v466, %v473
    %v476 = vunpack.c.l.s4 1966171168
    %v477 = vunpack.c.0.s8 %v476
    %v478 = vlaneseq
    %v479 = vshrl.u32 %v478, 7
    %v480 = vsub.s32 %v477, %v479
    %v481 = vrot.slane %v467, %v480
    %s482 = scalar_lea.vmem [#allocation7], 32
    %v483 = vld [vmem:[%s482] sm:$0xff]
    %s484 = scalar_lea.vmem [#allocation8], 32
    %v485 = vld [vmem:[%s484] sm:$0xff]
    %v486 = vlaneseq
    %v487 = vshrl.u32 %v486, 7
    %v488 = vsub.s32 0, %v487
    %v489 = vrot.slane %v449, %v488
    %v490 = vlaneseq
    %v491 = vshrl.u32 %v490, 7
    %v492 = vsub.s32 0, %v491
    %v493 = vrot.slane %v456, %v492
    %v496 = vmul.f32 %v489, %v483
    %v497 = vmul.f32 %v493, %v483
    %v498 = vlaneseq
    %v499 = vshrl.u32 %v498, 7
    %v500 = vsub.s32 0, %v499
    %v501 = vrot.slane %v474, %v500
    %v502 = vlaneseq
    %v503 = vshrl.u32 %v502, 7
    %v504 = vsub.s32 0, %v503
    %v505 = vrot.slane %v481, %v504
    %v508 = vmul.f32 %v501, %v485
    %v509 = vmul.f32 %v505, %v485
    %v510 = vsub.f32 %v496, %v508
    %v511 = vsub.f32 %v497, %v509
    %v512 = vadd.f32 %v422, %v510
    %v513 = vadd.f32 %v423, %v511
    %v514 = vmul.f32 %v489, %v485
    %v515 = vmul.f32 %v493, %v485
    %v516 = vmul.f32 %v501, %v483
    %v517 = vmul.f32 %v505, %v483
    %v518 = vadd.f32 %v514, %v516
    %v519 = vadd.f32 %v515, %v517
    %v520 = vadd.f32 %v430, %v518
    %v521 = vadd.f32 %v431, %v519
    %s522 = scalar_lea.vmem [#allocation2], 10
    %v523 = vld [vmem:[%s522] sm:$0x3]
    %v526 = vunpack.c.l.s4 1966171168
    %v527 = vunpack.c.0.s8 %v526
    %v528 = vlaneseq
    %v529 = vshrl.u32 %v528, 7
    %v530 = vsub.s32 %v527, %v529
    %v531 = vrot.slane %v523, %v530
    %v532 = vcombine.high %v531, %v531
    %v534 = vunpack.c.l.s4 1966171168
    %v535 = vunpack.c.0.s8 %v534
    %v536 = vlaneseq
    %v537 = vshrl.u32 %v536, 7
    %v538 = vsub.s32 %v535, %v537
    %v539 = vrot.slane %v531, %v538
    %v541 = vunpack.c.l.s4 1966171168
    %v542 = vunpack.c.0.s8 %v541
    %v543 = vlaneseq
    %v544 = vshrl.u32 %v543, 7
    %v545 = vsub.s32 %v542, %v544
    %v546 = vrot.slane %v532, %v545
    %s547 = scalar_lea.vmem [#allocation5], 10
    %v548 = vld [vmem:[%s547] sm:$0x3]
    %v551 = vunpack.c.l.s4 1966171168
    %v552 = vunpack.c.0.s8 %v551
    %v553 = vlaneseq
    %v554 = vshrl.u32 %v553, 7
    %v555 = vsub.s32 %v552, %v554
    %v556 = vrot.slane %v548, %v555
    %v557 = vcombine.high %v556, %v556
    %v559 = vunpack.c.l.s4 1966171168
    %v560 = vunpack.c.0.s8 %v559
    %v561 = vlaneseq
    %v562 = vshrl.u32 %v561, 7
    %v563 = vsub.s32 %v560, %v562
    %v564 = vrot.slane %v556, %v563
    %v566 = vunpack.c.l.s4 1966171168
    %v567 = vunpack.c.0.s8 %v566
    %v568 = vlaneseq
    %v569 = vshrl.u32 %v568, 7
    %v570 = vsub.s32 %v567, %v569
    %v571 = vrot.slane %v557, %v570
    %s572 = scalar_lea.vmem [#allocation7], 40
    %v573 = vld [vmem:[%s572] sm:$0xff]
    %s574 = scalar_lea.vmem [#allocation8], 40
    %v575 = vld [vmem:[%s574] sm:$0xff]
    %v576 = vlaneseq
    %v577 = vshrl.u32 %v576, 7
    %v578 = vsub.s32 0, %v577
    %v579 = vrot.slane %v539, %v578
    %v580 = vlaneseq
    %v581 = vshrl.u32 %v580, 7
    %v582 = vsub.s32 0, %v581
    %v583 = vrot.slane %v546, %v582
    %v586 = vmul.f32 %v579, %v573
    %v587 = vmul.f32 %v583, %v573
    %v588 = vlaneseq
    %v589 = vshrl.u32 %v588, 7
    %v590 = vsub.s32 0, %v589
    %v591 = vrot.slane %v564, %v590
    %v592 = vlaneseq
    %v593 = vshrl.u32 %v592, 7
    %v594 = vsub.s32 0, %v593
    %v595 = vrot.slane %v571, %v594
    %v598 = vmul.f32 %v591, %v575
    %v599 = vmul.f32 %v595, %v575
    %v600 = vsub.f32 %v586, %v598
    %v601 = vsub.f32 %v587, %v599
    %v602 = vadd.f32 %v512, %v600
    %v603 = vadd.f32 %v513, %v601
    %v604 = vmul.f32 %v579, %v575
    %v605 = vmul.f32 %v583, %v575
    %v606 = vmul.f32 %v591, %v573
    %v607 = vmul.f32 %v595, %v573
    %v608 = vadd.f32 %v604, %v606
    %v609 = vadd.f32 %v605, %v607
    %v610 = vadd.f32 %v520, %v608
    %v611 = vadd.f32 %v521, %v609
    %s612 = scalar_lea.vmem [#allocation2], 12
    %v613 = vld [vmem:[%s612] sm:$0x3]
    %v616 = vunpack.c.l.s4 1966171168
    %v617 = vunpack.c.0.s8 %v616
    %v618 = vlaneseq
    %v619 = vshrl.u32 %v618, 7
    %v620 = vsub.s32 %v617, %v619
    %v621 = vrot.slane %v613, %v620
    %v622 = vcombine.high %v621, %v621
    %v624 = vunpack.c.l.s4 1966171168
    %v625 = vunpack.c.0.s8 %v624
    %v626 = vlaneseq
    %v627 = vshrl.u32 %v626, 7
    %v628 = vsub.s32 %v625, %v627
    %v629 = vrot.slane %v621, %v628
    %v631 = vunpack.c.l.s4 1966171168
    %v632 = vunpack.c.0.s8 %v631
    %v633 = vlaneseq
    %v634 = vshrl.u32 %v633, 7
    %v635 = vsub.s32 %v632, %v634
    %v636 = vrot.slane %v622, %v635
    %s637 = scalar_lea.vmem [#allocation5], 12
    %v638 = vld [vmem:[%s637] sm:$0x3]
    %v641 = vunpack.c.l.s4 1966171168
    %v642 = vunpack.c.0.s8 %v641
    %v643 = vlaneseq
    %v644 = vshrl.u32 %v643, 7
    %v645 = vsub.s32 %v642, %v644
    %v646 = vrot.slane %v638, %v645
    %v647 = vcombine.high %v646, %v646
    %v649 = vunpack.c.l.s4 1966171168
    %v650 = vunpack.c.0.s8 %v649
    %v651 = vlaneseq
    %v652 = vshrl.u32 %v651, 7
    %v653 = vsub.s32 %v650, %v652
    %v654 = vrot.slane %v646, %v653
    %v656 = vunpack.c.l.s4 1966171168
    %v657 = vunpack.c.0.s8 %v656
    %v658 = vlaneseq
    %v659 = vshrl.u32 %v658, 7
    %v660 = vsub.s32 %v657, %v659
    %v661 = vrot.slane %v647, %v660
    %s662 = scalar_lea.vmem [#allocation7], 48
    %v663 = vld [vmem:[%s662] sm:$0xff]
    %s664 = scalar_lea.vmem [#allocation8], 48
    %v665 = vld [vmem:[%s664] sm:$0xff]
    %v666 = vlaneseq
    %v667 = vshrl.u32 %v666, 7
    %v668 = vsub.s32 0, %v667
    %v669 = vrot.slane %v629, %v668
    %v670 = vlaneseq
    %v671 = vshrl.u32 %v670, 7
    %v672 = vsub.s32 0, %v671
    %v673 = vrot.slane %v636, %v672
    %v676 = vmul.f32 %v669, %v663
    %v677 = vmul.f32 %v673, %v663
    %v678 = vlaneseq
    %v679 = vshrl.u32 %v678, 7
    %v680 = vsub.s32 0, %v679
    %v681 = vrot.slane %v654, %v680
    %v682 = vlaneseq
    %v683 = vshrl.u32 %v682, 7
    %v684 = vsub.s32 0, %v683
    %v685 = vrot.slane %v661, %v684
    %v688 = vmul.f32 %v681, %v665
    %v689 = vmul.f32 %v685, %v665
    %v690 = vsub.f32 %v676, %v688
    %v691 = vsub.f32 %v677, %v689
    %v692 = vadd.f32 %v602, %v690
    %v693 = vadd.f32 %v603, %v691
    %v694 = vmul.f32 %v669, %v665
    %v695 = vmul.f32 %v673, %v665
    %v696 = vmul.f32 %v681, %v663
    %v697 = vmul.f32 %v685, %v663
    %v698 = vadd.f32 %v694, %v696
    %v699 = vadd.f32 %v695, %v697
    %v700 = vadd.f32 %v610, %v698
    %v701 = vadd.f32 %v611, %v699
    %s702 = scalar_lea.vmem [#allocation2], 14
    %v703 = vld [vmem:[%s702] sm:$0x3]
    %v706 = vunpack.c.l.s4 1966171168
    %v707 = vunpack.c.0.s8 %v706
    %v708 = vlaneseq
    %v709 = vshrl.u32 %v708, 7
    %v710 = vsub.s32 %v707, %v709
    %v711 = vrot.slane %v703, %v710
    %v712 = vcombine.high %v711, %v711
    %v714 = vunpack.c.l.s4 1966171168
    %v715 = vunpack.c.0.s8 %v714
    %v716 = vlaneseq
    %v717 = vshrl.u32 %v716, 7
    %v718 = vsub.s32 %v715, %v717
    %v719 = vrot.slane %v711, %v718
    %v721 = vunpack.c.l.s4 1966171168
    %v722 = vunpack.c.0.s8 %v721
    %v723 = vlaneseq
    %v724 = vshrl.u32 %v723, 7
    %v725 = vsub.s32 %v722, %v724
    %v726 = vrot.slane %v712, %v725
    %s727 = scalar_lea.vmem [#allocation5], 14
    %v728 = vld [vmem:[%s727] sm:$0x3]
    %v731 = vunpack.c.l.s4 1966171168
    %v732 = vunpack.c.0.s8 %v731
    %v733 = vlaneseq
    %v734 = vshrl.u32 %v733, 7
    %v735 = vsub.s32 %v732, %v734
    %v736 = vrot.slane %v728, %v735
    %v737 = vcombine.high %v736, %v736
    %v739 = vunpack.c.l.s4 1966171168
    %v740 = vunpack.c.0.s8 %v739
    %v741 = vlaneseq
    %v742 = vshrl.u32 %v741, 7
    %v743 = vsub.s32 %v740, %v742
    %v744 = vrot.slane %v736, %v743
    %v746 = vunpack.c.l.s4 1966171168
    %v747 = vunpack.c.0.s8 %v746
    %v748 = vlaneseq
    %v749 = vshrl.u32 %v748, 7
    %v750 = vsub.s32 %v747, %v749
    %v751 = vrot.slane %v737, %v750
    %s752 = scalar_lea.vmem [#allocation7], 56
    %v753 = vld [vmem:[%s752] sm:$0xff]
    %s754 = scalar_lea.vmem [#allocation8], 56
    %v755 = vld [vmem:[%s754] sm:$0xff]
    %v756 = vlaneseq
    %v757 = vshrl.u32 %v756, 7
    %v758 = vsub.s32 0, %v757
    %v759 = vrot.slane %v719, %v758
    %v760 = vlaneseq
    %v761 = vshrl.u32 %v760, 7
    %v762 = vsub.s32 0, %v761
    %v763 = vrot.slane %v726, %v762
    %v766 = vmul.f32 %v759, %v753
    %v767 = vmul.f32 %v763, %v753
    %v768 = vlaneseq
    %v769 = vshrl.u32 %v768, 7
    %v770 = vsub.s32 0, %v769
    %v771 = vrot.slane %v744, %v770
    %v772 = vlaneseq
    %v773 = vshrl.u32 %v772, 7
    %v774 = vsub.s32 0, %v773
    %v775 = vrot.slane %v751, %v774
    %v778 = vmul.f32 %v771, %v755
    %v779 = vmul.f32 %v775, %v755
    %v780 = vsub.f32 %v766, %v778
    %v781 = vsub.f32 %v767, %v779
    %v782 = vadd.f32 %v692, %v780
    %v783 = vadd.f32 %v693, %v781
    %v784 = vmul.f32 %v759, %v755
    %v785 = vmul.f32 %v763, %v755
    %v786 = vmul.f32 %v771, %v753
    %v787 = vmul.f32 %v775, %v753
    %v788 = vadd.f32 %v784, %v786
    %v789 = vadd.f32 %v785, %v787
    %v790 = vadd.f32 %v700, %v788
    %v791 = vadd.f32 %v701, %v789
    %792 = vst [vmem:[#allocation10] sm:$0xff] %v782
    %793 = vst [vmem:[#allocation10 + $0x8] sm:$0xff] %v783
    %794 = vst [vmem:[#allocation11] sm:$0xff] %v790
    %795 = vst [vmem:[#allocation11 + $0x8] sm:$0xff] %v791
    // Predicated region
    $region34: #{tpu_custom_call.1} parent=1 // pred_check
      _
    $region35: #{tpu_custom_call.1} parent=1 // pred_check_branch
      %797 = sbr.rel (0) target = $region37
    $region36: #{tpu_custom_call.1} parent=1 // pred_region
      %s799 = ssub.s32 256, 256
      %800 = vsyncadd [#allocation4], %s799
      %s801 = sshll.u32 [#allocation10], 4
      %s802 = int_to_ptr.vmem [resolvable:$true] %s801
      %807 = dma.vmem_to_hbm [thread:$0]  %s802, 256, %s4, [#allocation4], 128, 128, 8
    $region37: #{tpu_custom_call.1} parent=1 // pred_fallthru
      _
    // Predicated region
    $region38: #{tpu_custom_call.1} parent=1 // pred_check
      _
    $region39: #{tpu_custom_call.1} parent=1 // pred_check_branch
      %809 = sbr.rel (0) target = $region41
    $region40: #{tpu_custom_call.1} parent=1 // pred_region
      %s811 = ssub.s32 256, 256
      %812 = vsyncadd [#allocation12], %s811
      %s813 = sshll.u32 [#allocation11], 4
      %s814 = int_to_ptr.vmem [resolvable:$true] %s813
      %819 = dma.vmem_to_hbm [thread:$0]  %s814, 256, %s5, [#allocation12], 128, 128, 8
    $region41: #{tpu_custom_call.1} parent=1 // pred_fallthru
      _
    // Predicated region
    $region42: #{tpu_custom_call.1} parent=1 // pred_check
      _
    $region43: #{tpu_custom_call.1} parent=1 // pred_check_branch
      %821 = sbr.rel (0) target = $region45
    $region44: #{tpu_custom_call.1} parent=1 // pred_region
      %822 = dma.done [#allocation4], 256
    $region45: #{tpu_custom_call.1} parent=1 // pred_fallthru
      _
    // Predicated region
    $region46: #{tpu_custom_call.1} parent=1 // pred_check
      _
    $region47: #{tpu_custom_call.1} parent=1 // pred_check_branch
      %824 = sbr.rel (0) target = $region49
    $region48: #{tpu_custom_call.1} parent=1 // pred_region
      %825 = dma.done [#allocation12], 256
    $region49: #{tpu_custom_call.1} parent=1 // pred_fallthru
      _
    %826 = vsyncpa [#allocation3], 1
    %827 = vsyncpa [#allocation6], 1
    %828 = vsyncpa [#allocation9], 1
    %829 = vsyncpa [#allocation4], 1
    %830 = vsyncpa [#allocation12], 1

</llo_original>
